<compile_context>
chip_gen: v7x
topology: tpu7x:2x2x1
jax: 0.10.0
libtpu: 0.0.40
codegen_flags: <defaults>
</compile_context>

<pallas_src>
import jax
import jax.numpy as jnp
from jax.experimental import pallas as pl
from jax.experimental.pallas import tpu as pltpu

LAMBDA = 100.0
_LANES = 128
_SUBLANES = 8


def _make_rhythmnet_kernel(n_valid, n_padded, weight):
    """Build the kernel with the valid-element count and lambda baked in."""
    needs_mask = n_padded != n_valid
    inv_n = 1.0 / float(n_valid)

    def kernel(rt_ref, gru_ref, out_ref):
        # rt_ref: (2, B, C)  -- [0] = resnet_outputs, [1] = target.  VMEM.
        rt = rt_ref[...].astype(jnp.float32)
        l1 = jnp.mean(jnp.abs(rt[0] - rt[1]))

        # gru_ref: (rows, 128) sublane/lane-dense slab of the flattened GRU
        # outputs (zero-padded to rows*128 == n_padded).  VMEM.
        g = gru_ref[...].astype(jnp.float32)
        rows, lanes = g.shape

        if needs_mask:
            flat_idx = (
                jax.lax.broadcasted_iota(jnp.int32, (rows, lanes), 0) * lanes
                + jax.lax.broadcasted_iota(jnp.int32, (rows, lanes), 1)
            )
            mask = flat_idx < n_valid
            g_mean = jnp.sum(jnp.where(mask, g, 0.0)) * jnp.float32(inv_n)
            smooth = jnp.sum(jnp.where(mask, jnp.abs(g - g_mean), 0.0)) * jnp.float32(inv_n)
        else:
            g_mean = jnp.sum(g) * jnp.float32(inv_n)
            smooth = jnp.sum(jnp.abs(g - g_mean)) * jnp.float32(inv_n)

        # Scalar result on the scalar path (SMEM output).
        out_ref[0, 0] = l1 + jnp.float32(weight) * smooth

    return kernel


def rhythmnet_loss(resnet_outputs, gru_outputs, target, weight=LAMBDA):
    """Pallas implementation of RhythmNetLoss.forward. Returns a scalar f32."""
    # Merge the two tiny (B, C) tensors into one input -> one DMA instead of two.
    rt = jnp.stack([resnet_outputs, target], axis=0)  # (2, B, C)

    # Flatten GRU outputs and pad to a full-vreg-dense (rows, 128) slab
    # (rows a multiple of 8). Padded elements are masked inside the kernel.
    g_flat = gru_outputs.reshape(-1)
    n = g_flat.shape[0]
    tile = _LANES * _SUBLANES
    n_padded = ((n + tile - 1) // tile) * tile
    if n_padded != n:
        g_flat = jnp.pad(g_flat, (0, n_padded - n))
    gru_slab = g_flat.reshape(n_padded // _LANES, _LANES)

    kernel = _make_rhythmnet_kernel(n, n_padded, float(weight))

    out = pl.pallas_call(
        kernel,
        out_shape=jax.ShapeDtypeStruct((1, 1), jnp.float32),
        in_specs=[
            pl.BlockSpec(memory_space=pltpu.VMEM),
            pl.BlockSpec(memory_space=pltpu.VMEM),
        ],
        out_specs=pl.BlockSpec(memory_space=pltpu.MemorySpace.SMEM),
    )(rt, gru_slab)
    return out[0, 0]


def rhythmnet_loss_ref(resnet_outputs, gru_outputs, target, weight=LAMBDA):
    """Pure-JAX reference (mirrors the PyTorch semantics)."""
    l1 = jnp.mean(jnp.abs(resnet_outputs.astype(jnp.float32)
                          - target.astype(jnp.float32)))
    g = gru_outputs.astype(jnp.float32).reshape(-1)
    smooth = jnp.mean(jnp.abs(g - jnp.mean(g)))
    return l1 + weight * smooth


if __name__ == "__main__":
    key = jax.random.PRNGKey(0)
    k1, k2, k3 = jax.random.split(key, 3)

    B, C = 2, 4        # resnet_outputs / target: (batch, num_classes)
    S, H = 8, 32       # gru_outputs: (batch, seq_len, hidden)

    resnet_outputs = jax.random.normal(k1, (B, C), dtype=jnp.float32) * 10.0 + 70.0
    target = jax.random.normal(k2, (B, C), dtype=jnp.float32) * 10.0 + 70.0
    gru_outputs = jax.random.normal(k3, (B, S, H), dtype=jnp.float32) * 5.0 + 70.0

    loss = rhythmnet_loss(resnet_outputs, gru_outputs, target)
    loss = jax.block_until_ready(loss)

    ref = rhythmnet_loss_ref(resnet_outputs, gru_outputs, target)
    assert jnp.allclose(loss, ref, rtol=1e-5, atol=1e-4), (loss, ref)

    print("KERNEL_OK")
</pallas_src>

<mosaic_0001>
module attributes {stable_mosaic.version = 11 : i64} {
  func.func @kernel(%arg0: memref<2x2x4xf32, #tpu.memory_space<vmem>>, %arg1: memref<8x128xf32, #tpu.memory_space<vmem>>, %arg2: memref<1x1xf32, #tpu.memory_space<smem>>) attributes {dimension_semantics = [], scalar_prefetch = 0 : i64, scratch_operands = 0 : i64, tpu.core_type = #tpu.core_type<tc>} {
    %c0 = arith.constant 0 : index
    %c0_0 = arith.constant 0 : index
    %c0_1 = arith.constant 0 : index
    %0 = vector.load %arg0[%c0, %c0_0, %c0_1] : memref<2x2x4xf32, #tpu.memory_space<vmem>>, vector<2x2x4xf32>
    %1 = vector.extract_strided_slice %0 {offsets = [0, 0, 0], sizes = [1, 2, 4], strides = [1, 1, 1]} : vector<2x2x4xf32> to vector<1x2x4xf32>
    %2 = vector.shape_cast %1 : vector<1x2x4xf32> to vector<2x4xf32>
    %3 = vector.extract_strided_slice %0 {offsets = [1, 0, 0], sizes = [1, 2, 4], strides = [1, 1, 1]} : vector<2x2x4xf32> to vector<1x2x4xf32>
    %4 = vector.shape_cast %3 : vector<1x2x4xf32> to vector<2x4xf32>
    %5 = arith.subf %2, %4 : vector<2x4xf32>
    %6 = math.absf %5 : vector<2x4xf32>
    %7 = vector.shape_cast %6 : vector<2x4xf32> to vector<1x2x4xf32>
    %cst = arith.constant dense<0.000000e+00> : vector<1xf32>
    %8 = vector.multi_reduction <add>, %7, %cst [1, 2] : vector<1x2x4xf32> to vector<1xf32>
    %9 = vector.shape_cast %8 : vector<1xf32> to vector<1x1x1xf32>
    %10 = vector.extract %9[0, 0, 0] : f32 from vector<1x1x1xf32>
    %cst_2 = arith.constant 8.000000e+00 : f32
    %11 = arith.divf %10, %cst_2 : f32
    %c0_3 = arith.constant 0 : index
    %c0_4 = arith.constant 0 : index
    %12 = vector.load %arg1[%c0_3, %c0_4] : memref<8x128xf32, #tpu.memory_space<vmem>>, vector<8x128xf32>
    %13 = tpu.iota {dimensions = array<i32: 0>} : vector<8x128xi32>
    %c128_i32 = arith.constant 128 : i32
    %14 = vector.broadcast %c128_i32 : i32 to vector<8x128xi32>
    %15 = arith.muli %13, %14 : vector<8x128xi32>
    %16 = tpu.iota {dimensions = array<i32: 1>} : vector<8x128xi32>
    %17 = arith.addi %15, %16 : vector<8x128xi32>
    %c512_i32 = arith.constant 512 : i32
    %18 = vector.broadcast %c512_i32 : i32 to vector<8x128xi32>
    %19 = arith.cmpi slt, %17, %18 : vector<8x128xi32>
    %cst_5 = arith.constant 0.000000e+00 : f32
    %20 = vector.broadcast %cst_5 : f32 to vector<8x128xf32>
    %21 = arith.select %19, %12, %20 : vector<8x128xi1>, vector<8x128xf32>
    %22 = vector.shape_cast %21 : vector<8x128xf32> to vector<1x8x128xf32>
    %cst_6 = arith.constant dense<0.000000e+00> : vector<1xf32>
    %23 = vector.multi_reduction <add>, %22, %cst_6 [1, 2] : vector<1x8x128xf32> to vector<1xf32>
    %24 = vector.shape_cast %23 : vector<1xf32> to vector<1x1x1xf32>
    %25 = vector.extract %24[0, 0, 0] : f32 from vector<1x1x1xf32>
    %cst_7 = arith.constant 0.001953125 : f32
    %26 = arith.mulf %25, %cst_7 : f32
    %27 = vector.broadcast %26 : f32 to vector<8x128xf32>
    %28 = arith.subf %12, %27 : vector<8x128xf32>
    %29 = math.absf %28 : vector<8x128xf32>
    %cst_8 = arith.constant 0.000000e+00 : f32
    %30 = vector.broadcast %cst_8 : f32 to vector<8x128xf32>
    %31 = arith.select %19, %29, %30 : vector<8x128xi1>, vector<8x128xf32>
    %32 = vector.shape_cast %31 : vector<8x128xf32> to vector<1x8x128xf32>
    %cst_9 = arith.constant dense<0.000000e+00> : vector<1xf32>
    %33 = vector.multi_reduction <add>, %32, %cst_9 [1, 2] : vector<1x8x128xf32> to vector<1xf32>
    %34 = vector.shape_cast %33 : vector<1xf32> to vector<1x1x1xf32>
    %35 = vector.extract %34[0, 0, 0] : f32 from vector<1x1x1xf32>
    %cst_10 = arith.constant 0.001953125 : f32
    %36 = arith.mulf %35, %cst_10 : f32
    %cst_11 = arith.constant 1.000000e+02 : f32
    %37 = arith.mulf %cst_11, %36 : f32
    %38 = arith.addf %11, %37 : f32
    %c0_12 = arith.constant 0 : index
    %c0_13 = arith.constant 0 : index
    %39 = memref.load %arg2[%c0_12, %c0_13] : memref<1x1xf32, #tpu.memory_space<smem>>
    memref.store %38, %arg2[%c0_12, %c0_13] : memref<1x1xf32, #tpu.memory_space<smem>>
    return
  }
}

</mosaic_0001>

<llo_original>
// kernel: tpu_custom_call.1
$region0: #{tpu_custom_call.1}
  #allocation0 [shape = 'u32[]', space=smem, size = 0x4, offset = 0x4, fixed_abs, tag = 'smem constant byte address 0x4 - core index']
  #allocation1 [shape = 'u32[144,128]{1,0:T(1,128)}', space=vmem, size = 0x12000, scoped, tag = 'internal scratch']
  %s0 = inlined_call_operand.hbm [shape: f32[2,2,4], index: 0, kind: input, shape index: {}]
  %s1 = inlined_call_operand.hbm [shape: f32[8,128], index: 1, kind: input, shape index: {}]
  %s2 = inlined_call_operand.hbm [shape: f32[1,1], index: 2, kind: output, shape index: {}]
  %s3 = sld [smem:[#allocation0]]
  $region26: #{tpu_custom_call.1} parent=0
    _
  %s5 = ssub.s32 1, %s3
  %s6 = scalar_select 0, %s5, %s3
  $region1: #{tpu_custom_call.1} parent=0
    #allocation2 [shape = 'u8[2048]{0}', space=vmem, size = 0x800, scoped, tag = 'input window, operand 0, single buffered']
    #allocation3 [shape = 's32[1]{0}', space=sflag, size = 0x4, scoped, tag = 'scoped memory for tpu_custom_call.1']
    #allocation4 [shape = 's32[1]{0}', space=sflag, size = 0x4, scoped, tag = 'scoped memory for tpu_custom_call.1']
    #allocation5 [shape = 'u8[4096]{0}', space=vmem, size = 0x1000, scoped, tag = 'input window, operand 1, single buffered']
    #allocation6 [shape = 's32[1]{0}', space=sflag, size = 0x4, scoped, tag = 'scoped memory for tpu_custom_call.1']
    #allocation7 [shape = 'u8[512]{0}', space=smem, size = 0x200, scoped, tag = 'output window, operand 0, single buffered']
    %7 = vsyncpa [#allocation3], 0
    %8 = vsyncpa [#allocation6], 0
    %9 = vsyncpa [#allocation4], 0
    // Predicated region
    $region2: #{tpu_custom_call.1} parent=1 // pred_check
      _
    $region3: #{tpu_custom_call.1} parent=1 // pred_check_branch
      %11 = sbr.rel (0) target = $region5
    $region4: #{tpu_custom_call.1} parent=1 // pred_region
      %s13 = ssub.s32 64, 64
      %14 = vsyncadd [#allocation3], %s13
      %s15 = sshll.u32 [#allocation2], 4
      %s16 = int_to_ptr.vmem [resolvable:$true] %s15
      %21 = dma.hbm_to_vmem [thread:$0]  %s0, 64, %s16, [#allocation3], 32, 32, 2
    $region5: #{tpu_custom_call.1} parent=1 // pred_fallthru
      _
    // Predicated region
    $region6: #{tpu_custom_call.1} parent=1 // pred_check
      _
    $region7: #{tpu_custom_call.1} parent=1 // pred_check_branch
      %23 = sbr.rel (0) target = $region9
    $region8: #{tpu_custom_call.1} parent=1 // pred_region
      %s25 = ssub.s32 128, 128
      %26 = vsyncadd [#allocation6], %s25
      %s28 = sshll.u32 [#allocation5], 4
      %s29 = int_to_ptr.vmem [resolvable:$true] %s28
      %31 = dma.hbm_to_vmem [thread:$0]  %s1, 128, %s29, [#allocation6]
    $region9: #{tpu_custom_call.1} parent=1 // pred_fallthru
      _
    // Predicated region
    $region10: #{tpu_custom_call.1} parent=1 // pred_check
      _
    $region11: #{tpu_custom_call.1} parent=1 // pred_check_branch
      %33 = sbr.rel (0) target = $region13
    $region12: #{tpu_custom_call.1} parent=1 // pred_region
      %34 = dma.done [#allocation3], 64
    $region13: #{tpu_custom_call.1} parent=1 // pred_fallthru
      _
    // Predicated region
    $region14: #{tpu_custom_call.1} parent=1 // pred_check
      _
    $region15: #{tpu_custom_call.1} parent=1 // pred_check_branch
      %36 = sbr.rel (0) target = $region17
    $region16: #{tpu_custom_call.1} parent=1 // pred_region
      %37 = dma.done [#allocation6], 128
    $region17: #{tpu_custom_call.1} parent=1 // pred_fallthru
      _
    %v38 = vld [vmem:[#allocation2] sm:$0x3]
    %v39 = vld [vmem:[#allocation2 + $0x2] sm:$0x3]
    %v40 = vsub.f32 %v38, %v39
    %v41 = vand.u32 2147483647, %v40
    %vm42 = vcmask 25600
    %v43 = vsel %vm42, %v41, 0.0
    %44 = vadd.xlane.f32.xlu0 %v43
    %v45 = vpop.xlane.xlu0 %44
    %v46 = vrot.slane %v45, 4
    %v47 = vadd.f32 %v45, %v46
    %v48 = vrot.slane %v47, 2
    %v49 = vadd.f32 %v47, %v48
    %v50 = vrot.slane %v49, 1
    %v51 = vadd.f32 %v49, %v50
    %s52 = vtos %v51
    %v53 = vrcp.pop 8.0
    %s54 = vtos %v53
    %s55 = smul.f32 %s52, %s54
    %v56 = vld [vmem:[#allocation5] sm:$0xff]
    %v57 = vlaneseq
    %v58 = vshrl.u32 %v57, 7
    %v59 = vmul.u32 %v58, 128
    %v60 = vlaneseq
    %v61 = vand.u32 %v60, 127
    %v62 = vadd.s32 %v59, %v61
    %vm63 = vcmp.lt.s32.totalorder %v62, 512
    %v64 = vsel %vm63, %v56, 0.0
    %65 = vadd.xlane.f32.xlu0 %v64
    %v66 = vpop.xlane.xlu0 %65
    %v67 = vrot.slane %v66, 4
    %v68 = vadd.f32 %v66, %v67
    %v69 = vrot.slane %v68, 2
    %v70 = vadd.f32 %v68, %v69
    %v71 = vrot.slane %v70, 1
    %v72 = vadd.f32 %v70, %v71
    %s73 = vtos %v72
    %s74 = smul.f32 %s73, 0.001953125
    %v75 = vstv %s74
    %v76 = vsub.f32 %v56, %v75
    %v77 = vand.u32 2147483647, %v76
    %v78 = vsel %vm63, %v77, 0.0
    %79 = vadd.xlane.f32.xlu0 %v78
    %v80 = vpop.xlane.xlu0 %79
    %v81 = vrot.slane %v80, 4
    %v82 = vadd.f32 %v80, %v81
    %v83 = vrot.slane %v82, 2
    %v84 = vadd.f32 %v82, %v83
    %v85 = vrot.slane %v84, 1
    %v86 = vadd.f32 %v84, %v85
    %s87 = vtos %v86
    %s88 = smul.f32 %s87, 0.001953125
    %s89 = smul.f32 %s88, 100.0
    %s90 = sadd.f32 %s55, %s89
    %s91 = scalar_lea.smem [#allocation7], 0
    %92 = sst [smem:[%s91]] %s90
    // Predicated region
    $region18: #{tpu_custom_call.1} parent=1 // pred_check
      _
    $region19: #{tpu_custom_call.1} parent=1 // pred_check_branch
      %94 = sbr.rel (0) target = $region21
    $region20: #{tpu_custom_call.1} parent=1 // pred_region
      %s96 = ssub.s32 16, 16
      %97 = vsyncadd [#allocation4], %s96
      %100 = dma.smem_to_hbm [#allocation7], 16, %s2, [#allocation4]
    $region21: #{tpu_custom_call.1} parent=1 // pred_fallthru
      _
    // Predicated region
    $region22: #{tpu_custom_call.1} parent=1 // pred_check
      _
    $region23: #{tpu_custom_call.1} parent=1 // pred_check_branch
      %102 = sbr.rel (0) target = $region25
    $region24: #{tpu_custom_call.1} parent=1 // pred_region
      %103 = dma.done [#allocation4], 16
    $region25: #{tpu_custom_call.1} parent=1 // pred_fallthru
      _
    %104 = sfence
    %105 = vsyncpa [#allocation3], 1
    %106 = vsyncpa [#allocation6], 1
    %107 = vsyncpa [#allocation4], 1

</llo_original>
